<compile_context>
chip_gen: v6e
topology: v6e:2x2x1
jax: 0.10.0
libtpu: 0.0.40
codegen_flags: <defaults>
</compile_context>

<pallas_src>
import functools

import jax
import jax.numpy as jnp
from jax.experimental import pallas as pl
from jax.experimental.pallas import tpu as pltpu


def _ce_ls_kernel(logits_ref, targets_ref, out_ref, *, epsilon, num_classes,
                  tile_b, batch_size):
    i = pl.program_id(0)

    x_raw = logits_ref[...]                                        # (TB, C) native dtype
    # Row max in the native dtype (exact for f32/bf16); promote only the scalars.
    m = jnp.max(x_raw, axis=1, keepdims=True).astype(jnp.float32)  # (TB, 1)
    x = x_raw.astype(jnp.float32)                                  # (TB, C)

    # logsumexp along the class (lane) axis -- the only transcendental pass.
    lse = m + jnp.log(jnp.sum(jnp.exp(x - m), axis=1, keepdims=True))   # (TB, 1)

    # x[target] via a (1, C) class-id iota broadcast against (TB, 1) targets
    # (no (TB, C) int32 temp), plus the plain row sum of x.
    # NOTE: out-of-range targets silently contribute x_t == 0 (PyTorch's
    # scatter_ would raise instead); targets are assumed in [0, C).
    tgt = targets_ref[...]                                         # (TB, 1) int32
    cls_ids = jax.lax.broadcasted_iota(jnp.int32, (1, num_classes), 1)
    x_t = jnp.sum(jnp.where(cls_ids == tgt, x, 0.0), axis=1, keepdims=True)
    sum_x = jnp.sum(x, axis=1, keepdims=True)                      # (TB, 1)

    # Folded label smoothing:
    #   loss_row = -(1-eps)*log_p[t] - (eps/C)*sum_c(log_p)
    #            = logsumexp(x) - (1-eps)*x[t] - (eps/C)*sum_c(x)
    per_row = lse - (1.0 - epsilon) * x_t - (epsilon / num_classes) * sum_x

    # Mask rows of the last (partial) batch tile so the mean is over true B.
    # Keep the select (padded rows may carry NaN/Inf from garbage reads).
    row_ids = i * tile_b + jax.lax.broadcasted_iota(jnp.int32, (tile_b, 1), 0)
    per_row = jnp.where(row_ids < batch_size, per_row, 0.0)

    partial = jnp.sum(per_row)
    # Lane-dense scalar write: one full (8, 128) f32 vreg, unmasked store.
    out_ref[...] = jnp.full(out_ref.shape, partial, dtype=jnp.float32)


def _vmem_budget_and_limit():
    """Generation-dependent VMEM budgets (v5e/v6e: 128 MiB, v7x: 64 MiB / TC)."""
    cap = 64 << 20                       # conservative default (v7x per-TC VMEM)
    try:
        info = pltpu.get_tpu_info()
        cap = int(getattr(info, "vmem_capacity_bytes", cap) or cap)
    except Exception:
        pass
    if cap >= (100 << 20):               # v5e / v6e class chips (128 MiB physical)
        budget, limit = 48 << 20, 96 << 20
    else:                                # v7x class chips (64 MiB per TensorCore)
        budget, limit = 20 << 20, 48 << 20
    return budget, min(limit, cap)


def _choose_tile_b(batch, num_classes, itemsize, vmem_budget_bytes):
    """Pick a batch-tile size whose double-buffered inputs + f32 temps fit VMEM."""
    # Sublane tile for the stored dtype: f32 -> 8, bf16 -> 16, int8/fp8 -> 32.
    sub = 8 * max(1, 4 // itemsize)
    # Per batch row: 2x double-buffered logits (stored dtype) + ~20 B/elem f32 temps.
    per_row_bytes = num_classes * (2 * itemsize + 20) + 64
    tb = max(1, vmem_budget_bytes // per_row_bytes)

    logits_bytes = batch * num_classes * itemsize
    if batch <= 64 or logits_bytes <= (512 << 10):
        return batch                     # tiny problem: single whole-batch tile

    # Force >= 2 (preferably 4) grid steps so double-buffered DMAs overlap
    # compute and the batch axis can shard across both TensorCores on v7x.
    target_tiles = 4 if batch >= 4 * sub else 2
    tb = min(tb, pl.cdiv(batch, target_tiles))
    tb = max(sub, (tb // sub) * sub)     # round to the dtype's sublane tile
    return min(tb, batch)


def cross_entropy_label_smooth(logits, targets, *, num_classes, epsilon=0.1,
                               tile_b=None):
    """logits: (B, C) float, targets: (B,) int -> scalar f32 loss (mean over B)."""
    B, C = logits.shape
    assert C == num_classes
    targets2d = targets.astype(jnp.int32).reshape(B, 1)

    itemsize = jnp.dtype(logits.dtype).itemsize
    vmem_budget, vmem_limit = _vmem_budget_and_limit()
    if tile_b is None:
        tile_b = _choose_tile_b(B, C, itemsize, vmem_budget)
    tile_b = int(tile_b)
    num_tiles = int(pl.cdiv(B, tile_b))

    kernel = functools.partial(
        _ce_ls_kernel,
        epsilon=float(epsilon),
        num_classes=int(num_classes),
        tile_b=tile_b,
        batch_size=int(B),
    )

    partials = pl.pallas_call(
        kernel,
        grid=(num_tiles,),
        out_shape=jax.ShapeDtypeStruct((num_tiles, 8, 128), jnp.float32),
        in_specs=[
            pl.BlockSpec((tile_b, C), lambda i: (i, 0)),   # logits tile
            pl.BlockSpec((tile_b, 1), lambda i: (i, 0)),   # target ids tile
        ],
        out_specs=pl.BlockSpec((1, 8, 128), lambda i: (i, 0, 0)),
        compiler_params=pltpu.CompilerParams(
            dimension_semantics=("parallel",),   # independent tiles -> both TCs on v7x
            vmem_limit_bytes=int(vmem_limit),
        ),
        cost_estimate=pl.CostEstimate(
            flops=6 * B * C,
            transcendentals=B * C,
            bytes_accessed=B * C * itemsize + B * 4 + num_tiles * 8 * 128 * 4,
        ),
    )(logits, targets2d)

    return jnp.sum(partials[:, 0, 0]) / B


def _reference(logits, targets, num_classes, epsilon):
    log_probs = jax.nn.log_softmax(logits.astype(jnp.float32), axis=1)
    one_hot = jax.nn.one_hot(targets, num_classes, dtype=jnp.float32)
    smoothed = (1.0 - epsilon) * one_hot + epsilon / num_classes
    return jnp.mean(jnp.sum(-smoothed * log_probs, axis=1))


if __name__ == "__main__":
    key = jax.random.PRNGKey(0)
    k1, k2, k3, k4, k5, k6 = jax.random.split(key, 6)

    # Case 1: tiny single-tile path (small batch, small class count).
    B1, C1 = 8, 32
    logits1 = jax.random.normal(k1, (B1, C1), dtype=jnp.float32)
    targets1 = jax.random.randint(k2, (B1,), 0, C1, dtype=jnp.int32)
    loss1 = cross_entropy_label_smooth(logits1, targets1, num_classes=C1, epsilon=0.1)
    jax.block_until_ready(loss1)
    ref1 = _reference(logits1, targets1, C1, 0.1)
    assert jnp.allclose(loss1, ref1, atol=1e-4, rtol=1e-5), (loss1, ref1)

    # Case 2: explicit small tile with a partial last tile (B % TB != 0).
    B2, C2 = 20, 128
    logits2 = jax.random.normal(k3, (B2, C2), dtype=jnp.float32)
    targets2 = jax.random.randint(k4, (B2,), 0, C2, dtype=jnp.int32)
    loss2 = cross_entropy_label_smooth(logits2, targets2, num_classes=C2,
                                       epsilon=0.1, tile_b=8)
    jax.block_until_ready(loss2)
    ref2 = _reference(logits2, targets2, C2, 0.1)
    assert jnp.allclose(loss2, ref2, atol=1e-4, rtol=1e-5), (loss2, ref2)

    # Case 3: auto-chosen multi-tile path (>= 2 grid steps, partial last tile).
    B3, C3 = 200, 1024
    logits3 = jax.random.normal(k5, (B3, C3), dtype=jnp.float32)
    targets3 = jax.random.randint(k6, (B3,), 0, C3, dtype=jnp.int32)
    loss3 = cross_entropy_label_smooth(logits3, targets3, num_classes=C3, epsilon=0.1)
    jax.block_until_ready(loss3)
    ref3 = _reference(logits3, targets3, C3, 0.1)
    assert jnp.allclose(loss3, ref3, atol=1e-4, rtol=1e-5), (loss3, ref3)

    print("KERNEL_OK")
</pallas_src>

<mosaic_0001>
module attributes {stable_mosaic.version = 11 : i64} {
  func.func @_ce_ls_kernel(%arg0: i32, %arg1: memref<8x32xf32, #tpu.memory_space<vmem>>, %arg2: memref<8x1xi32, #tpu.memory_space<vmem>>, %arg3: memref<1x8x128xf32, #tpu.memory_space<vmem>>) attributes {dimension_semantics = [#tpu.dimension_semantics<parallel>], iteration_bounds = array<i64: 1>, scalar_prefetch = 0 : i64, scratch_operands = 0 : i64, tpu.core_type = #tpu.core_type<tc>, window_params = [{transform_indices = @transform_0, window_bounds = array<i64: 8, 32>}, {transform_indices = @transform_1, window_bounds = array<i64: 8, 1>}, {transform_indices = @transform_2, window_bounds = array<i64: 1, 8, 128>}]} {
    %c0 = arith.constant 0 : index
    %c0_0 = arith.constant 0 : index
    %0 = vector.load %arg1[%c0, %c0_0] : memref<8x32xf32, #tpu.memory_space<vmem>>, vector<8x32xf32>
    %cst = arith.constant dense<0xFF800000> : vector<8xf32>
    %1 = vector.multi_reduction <maximumf>, %0, %cst [1] : vector<8x32xf32> to vector<8xf32>
    %2 = vector.shape_cast %1 : vector<8xf32> to vector<8x1xf32>
    %3 = vector.broadcast %2 : vector<8x1xf32> to vector<8x32xf32>
    %4 = arith.subf %0, %3 : vector<8x32xf32>
    %5 = math.exp %4 : vector<8x32xf32>
    %cst_1 = arith.constant dense<0.000000e+00> : vector<8xf32>
    %6 = vector.multi_reduction <add>, %5, %cst_1 [1] : vector<8x32xf32> to vector<8xf32>
    %7 = vector.shape_cast %6 : vector<8xf32> to vector<8x1xf32>
    %8 = math.log %7 : vector<8x1xf32>
    %9 = arith.addf %2, %8 : vector<8x1xf32>
    %c0_2 = arith.constant 0 : index
    %c0_3 = arith.constant 0 : index
    %10 = vector.load %arg2[%c0_2, %c0_3] : memref<8x1xi32, #tpu.memory_space<vmem>>, vector<8x1xi32>
    %11 = tpu.iota {dimensions = array<i32: 1>} : vector<1x32xi32>
    %12 = vector.broadcast %11 : vector<1x32xi32> to vector<8x32xi32>
    %13 = vector.broadcast %10 : vector<8x1xi32> to vector<8x32xi32>
    %14 = arith.cmpi eq, %12, %13 : vector<8x32xi32>
    %cst_4 = arith.constant 0.000000e+00 : f32
    %15 = vector.broadcast %cst_4 : f32 to vector<8x32xf32>
    %16 = arith.select %14, %0, %15 : vector<8x32xi1>, vector<8x32xf32>
    %cst_5 = arith.constant dense<0.000000e+00> : vector<8xf32>
    %17 = vector.multi_reduction <add>, %16, %cst_5 [1] : vector<8x32xf32> to vector<8xf32>
    %18 = vector.shape_cast %17 : vector<8xf32> to vector<8x1xf32>
    %cst_6 = arith.constant dense<0.000000e+00> : vector<8xf32>
    %19 = vector.multi_reduction <add>, %0, %cst_6 [1] : vector<8x32xf32> to vector<8xf32>
    %20 = vector.shape_cast %19 : vector<8xf32> to vector<8x1xf32>
    %cst_7 = arith.constant 0.899999976 : f32
    %21 = vector.broadcast %cst_7 : f32 to vector<8x1xf32>
    %22 = arith.mulf %21, %18 : vector<8x1xf32>
    %23 = arith.subf %9, %22 : vector<8x1xf32>
    %cst_8 = arith.constant 3.125000e-03 : f32
    %24 = vector.broadcast %cst_8 : f32 to vector<8x1xf32>
    %25 = arith.mulf %24, %20 : vector<8x1xf32>
    %26 = arith.subf %23, %25 : vector<8x1xf32>
    %c8_i32 = arith.constant 8 : i32
    %27 = arith.muli %arg0, %c8_i32 : i32
    %28 = tpu.iota {dimensions = array<i32: 0>} : vector<8x1xi32>
    %29 = vector.broadcast %27 : i32 to vector<8x1xi32>
    %30 = arith.addi %29, %28 : vector<8x1xi32>
    %c8_i32_9 = arith.constant 8 : i32
    %31 = vector.broadcast %c8_i32_9 : i32 to vector<8x1xi32>
    %32 = arith.cmpi slt, %30, %31 : vector<8x1xi32>
    %cst_10 = arith.constant 0.000000e+00 : f32
    %33 = vector.broadcast %cst_10 : f32 to vector<8x1xf32>
    %34 = arith.select %32, %26, %33 : vector<8x1xi1>, vector<8x1xf32>
    %35 = vector.shape_cast %34 : vector<8x1xf32> to vector<1x8x1xf32>
    %cst_11 = arith.constant dense<0.000000e+00> : vector<1xf32>
    %36 = vector.multi_reduction <add>, %35, %cst_11 [1, 2] : vector<1x8x1xf32> to vector<1xf32>
    %37 = vector.shape_cast %36 : vector<1xf32> to vector<1x1x1xf32>
    %38 = vector.extract %37[0, 0, 0] : f32 from vector<1x1x1xf32>
    %39 = vector.broadcast %38 : f32 to vector<1x8x128xf32>
    %c0_12 = arith.constant 0 : index
    %c0_13 = arith.constant 0 : index
    %c0_14 = arith.constant 0 : index
    %40 = vector.load %arg3[%c0_12, %c0_13, %c0_14] : memref<1x8x128xf32, #tpu.memory_space<vmem>>, vector<1x8x128xf32>
    tpu.vector_store %arg3[%c0_12, %c0_13, %c0_14], %39 {strides = array<i32>} : memref<1x8x128xf32, #tpu.memory_space<vmem>>, vector<1x8x128xf32>,
    return
  }
  func.func @transform_0(%arg0: i32) -> (i32, i32) {
    %c0_i32 = arith.constant 0 : i32
    %c0_i32_0 = arith.constant 0 : i32
    return %arg0, %c0_i32 : i32, i32
  }
  func.func @transform_1(%arg0: i32) -> (i32, i32) {
    %c0_i32 = arith.constant 0 : i32
    %c0_i32_0 = arith.constant 0 : i32
    return %arg0, %c0_i32 : i32, i32
  }
  func.func @transform_2(%arg0: i32) -> (i32, i32, i32) {
    %c0_i32 = arith.constant 0 : i32
    %c0_i32_0 = arith.constant 0 : i32
    %c0_i32_1 = arith.constant 0 : i32
    return %arg0, %c0_i32, %c0_i32_0 : i32, i32, i32
  }
}

</mosaic_0001>

<llo_original>
// kernel: tpu_custom_call.1
$region0: #{tpu_custom_call.1}
  #allocation0 [shape = 'u32[]', space=smem, size = 0x4, offset = 0x4, fixed_abs, tag = 'smem constant byte address 0x4 - core index']
  #allocation1 [shape = 'u32[144,128]{1,0:T(1,128)}', space=vmem, size = 0x12000, scoped, tag = 'internal scratch']
  %s0 = inlined_call_operand.vmem [shape: f32[8,32], index: 0, kind: input, shape index: {}]
  %s1 = inlined_call_operand.vmem [shape: s32[8,1], index: 1, kind: input, shape index: {}]
  %s2 = inlined_call_operand.hbm [shape: f32[1,8,128], index: 2, kind: output, shape index: {}]
  %s3 = sld [smem:[#allocation0]]
  $region18: #{tpu_custom_call.1} parent=0
    _
  %s5 = ssub.s32 1, %s3
  %s6 = scalar_select 0, %s5, %s3
  $region1: #{tpu_custom_call.1} parent=0
    #allocation2 [shape = 'u8[4096]{0}', space=vmem, size = 0x1000, scoped, tag = 'output window, operand 0, single buffered']
    #allocation3 [shape = 's32[1]{0}', space=sflag, size = 0x4, scoped, tag = 'scoped memory for tpu_custom_call.1']
    %7 = vsyncpa [#allocation3], 0
    // Predicated region
    $region2: #{tpu_custom_call.1} parent=1 // pred_check
      _
    $region3: #{tpu_custom_call.1} parent=1 // pred_check_branch
      %9 = sbr.rel (0) target = $region5
    $region4: #{tpu_custom_call.1} parent=1 // pred_region
      _
    $region5: #{tpu_custom_call.1} parent=1 // pred_fallthru
      _
    // Predicated region
    $region6: #{tpu_custom_call.1} parent=1 // pred_check
      _
    $region7: #{tpu_custom_call.1} parent=1 // pred_check_branch
      %11 = sbr.rel (0) target = $region9
    $region8: #{tpu_custom_call.1} parent=1 // pred_region
      _
    $region9: #{tpu_custom_call.1} parent=1 // pred_fallthru
      _
    %v12 = vld [vmem:[%s0] sm:$0xff]
    %vm13 = vcmask 261120
    %v14 = vsel %vm13, %v12, -inf
    %15 = vmax.xlane.f32.xlu0 %v14
    %v16 = vpop.xlane.xlu0 %15
    %v17 = vsub.f32 %v12, %v16
    %v18 = vmul.f32 %v17, 1.442695
    %v19 = vpow.pop %v18
    %v20 = vsel %vm13, %v19, 0.0
    %21 = vadd.xlane.f32.xlu0 %v20
    %v22 = vpop.xlane.xlu0 %21
    %v23 = vlog2.pop %v22
    %v24 = vmul.f32 %v23, 0.6931472
    %v25 = vadd.f32 %v16, %v24
    %v26 = vld [vmem:[%s1] sm:$0xff]
    %v27 = vlaneseq
    %v28 = vand.u32 %v27, 127
    %29 = vset.pattern.permute.xlu0 0
    %30 = vperm.xlu0 %29, %v26
    %v31 = vpop.permute.xlu0 %30
    %vm32 = vcmp.eq.s32.totalorder %v28, %v31
    %v33 = vsel %vm32, %v12, 0.0
    %v34 = vsel %vm13, %v33, 0.0
    %35 = vadd.xlane.f32.xlu0 %v34
    %v36 = vpop.xlane.xlu0 %35
    %v37 = vsel %vm13, %v12, 0.0
    %38 = vadd.xlane.f32.xlu0 %v37
    %v39 = vpop.xlane.xlu0 %38
    %v40 = vmul.f32 %v36, 0.9
    %v41 = vsub.f32 %v25, %v40
    %v42 = vmul.f32 %v39, 0.003125
    %v43 = vsub.f32 %v41, %v42
    %s44 = smul.u32 0, 8
    %v45 = vlaneseq
    %v46 = vshrl.u32 %v45, 7
    %v47 = vstv %s44
    %v48 = vadd.s32 %v47, %v46
    %vm49 = vcmp.lt.s32.totalorder %v48, 8
    %v50 = vsel %vm49, %v43, 0.0
    %vm51 = vcmask 7168
    %v52 = vsel %vm51, %v50, 0.0
    %53 = vadd.xlane.f32.xlu0 %v52
    %v54 = vpop.xlane.xlu0 %53
    %v55 = vrot.slane %v54, 4
    %v56 = vadd.f32 %v54, %v55
    %v57 = vrot.slane %v56, 2
    %v58 = vadd.f32 %v56, %v57
    %v59 = vrot.slane %v58, 1
    %v60 = vadd.f32 %v58, %v59
    %s61 = vtos %v60
    %v62 = vstv %s61
    %63 = vst [vmem:[#allocation2] sm:$0xff] %v62
    // Predicated region
    $region10: #{tpu_custom_call.1} parent=1 // pred_check
      _
    $region11: #{tpu_custom_call.1} parent=1 // pred_check_branch
      %65 = sbr.rel (0) target = $region13
    $region12: #{tpu_custom_call.1} parent=1 // pred_region
      %s67 = ssub.s32 128, 128
      %68 = vsyncadd [#allocation3], %s67
      %s70 = sshll.u32 [#allocation2], 4
      %s71 = int_to_ptr.vmem [resolvable:$true] %s70
      %73 = dma.vmem_to_hbm [thread:$0]  %s71, 128, %s2, [#allocation3]
    $region13: #{tpu_custom_call.1} parent=1 // pred_fallthru
      _
    // Predicated region
    $region14: #{tpu_custom_call.1} parent=1 // pred_check
      _
    $region15: #{tpu_custom_call.1} parent=1 // pred_check_branch
      %75 = sbr.rel (0) target = $region17
    $region16: #{tpu_custom_call.1} parent=1 // pred_region
      %76 = dma.done [#allocation3], 128
    $region17: #{tpu_custom_call.1} parent=1 // pred_fallthru
      _
    %77 = vsyncpa [#allocation3], 1

</llo_original>
